<compile_context>
chip_gen: v5e
topology: v5e:2x2
jax: 0.10.0
libtpu: 0.0.40
codegen_flags: <defaults>
</compile_context>

<pallas_src>
import functools

import jax
import jax.numpy as jnp
from jax.experimental import pallas as pl
from jax.experimental.pallas import tpu as pltpu


def _pool_kernel(x_ref, pooled_ref, *, inv_hw):
    """Per-channel spatial mean, accumulated in f32.

    x_ref:      (1, C, tHW) input tile (native dtype)
    pooled_ref: (1, C, 1)   f32 output block, resident across the HW grid axis
    """
    t = pl.program_id(1)

    @pl.when(t == 0)
    def _():
        pooled_ref[...] = jnp.zeros_like(pooled_ref)

    # Accumulate the spatial sum in f32 regardless of input dtype (bf16-safe).
    pooled_ref[...] += jnp.sum(x_ref[...], axis=-1, keepdims=True,
                               dtype=jnp.float32)

    @pl.when(t == pl.num_programs(1) - 1)
    def _():
        pooled_ref[...] = pooled_ref[...] * inv_hw


def _gate_kernel(pooled_ref, w1t_ref, b1_ref, w2t_ref, b2_ref, att_ref):
    """Batched channel-gate MLP for all N rows at once.

    pooled_ref: (N, C)   w1t_ref: (C, Cr)  b1_ref: (1, Cr)
    w2t_ref:    (Cr, C)  b2_ref:  (1, C)   att_ref: (N, C) f32
    """
    h = jnp.dot(pooled_ref[...], w1t_ref[...],
                preferred_element_type=jnp.float32) + b1_ref[...]
    h = jnp.maximum(h, 0.0)                                       # ReLU
    logits = jnp.dot(h, w2t_ref[...],
                     preferred_element_type=jnp.float32) + b2_ref[...]
    att_ref[...] = jax.nn.sigmoid(logits)


def _scale_kernel(x_ref, att_ref, o_ref):
    """out = x * att, broadcast over spatial, in the input's native dtype.

    x_ref: (1, C, tHW)   att_ref: (1, C, 1) f32   o_ref: (1, C, tHW)
    """
    att = att_ref[...].astype(o_ref.dtype)     # cast C values once, not C*HW
    o_ref[...] = x_ref[...] * att              # pure streaming multiply-store


def _choose_hw_tile(hw, c, itemsize, max_tile_bytes=2 * 1024 * 1024,
                    max_lanes=2048):
    """Largest multiple-of-128 divisor of hw within lane / VMEM budgets."""
    if hw % 128 != 0 or hw <= 128:
        # TODO(synk): zero-pad H*W up to a multiple of 128 for lane-dense
        # stores when it is not 128-aligned (mean divisor must stay true H*W).
        return hw
    budget_lanes = max(128, (max_tile_bytes // max(1, c * itemsize)) // 128 * 128)
    cap = min(hw, max_lanes, budget_lanes)
    best = 128
    for t in range(128, cap + 1, 128):
        if hw % t == 0:
            best = t
    return best


def channel_attention(x_nchw, w1, b1, w2, b2):
    """x_nchw: (N, C, H, W); w1: (Cr, C); b1: (Cr,); w2: (C, Cr); b2: (C,)."""
    N, C, H, W = x_nchw.shape
    Cr = w1.shape[0]
    HW = H * W

    x = x_nchw.reshape(N, C, HW)
    itemsize = x.dtype.itemsize
    thw = _choose_hw_tile(HW, C, itemsize)
    num_hw_tiles = HW // thw

    tile_bytes = C * thw * itemsize
    # in + out tiles, double-buffered, plus headroom; fits v5e/v6e/v7x limits.
    vmem_limit = int(min(max(8 * tile_bytes + (2 << 20), 8 << 20), 32 << 20))

    # ---- pass 1: per-channel spatial mean (f32 accumulation) ----------------
    pooled = pl.pallas_call(
        functools.partial(_pool_kernel, inv_hw=1.0 / HW),
        out_shape=jax.ShapeDtypeStruct((N, C, 1), jnp.float32),
        grid_spec=pltpu.PrefetchScalarGridSpec(
            num_scalar_prefetch=0,
            grid=(N, num_hw_tiles),
            in_specs=[pl.BlockSpec((1, C, thw), lambda n, t: (n, 0, t))],
            out_specs=pl.BlockSpec((1, C, 1), lambda n, t: (n, 0, 0)),
        ),
        compiler_params=pltpu.CompilerParams(
            dimension_semantics=("parallel", "arbitrary"),
            vmem_limit_bytes=vmem_limit),
        cost_estimate=pl.CostEstimate(
            flops=N * C * HW,
            transcendentals=0,
            bytes_accessed=N * C * HW * itemsize + N * C * 4),
    )(x)

    # ---- pass 2: batched gate MLP (both 1x1 convs + ReLU + sigmoid) ---------
    att = pl.pallas_call(
        _gate_kernel,
        out_shape=jax.ShapeDtypeStruct((N, C), jnp.float32),
        cost_estimate=pl.CostEstimate(
            flops=4 * N * C * Cr,
            transcendentals=N * C,
            bytes_accessed=(2 * N * C + 2 * C * Cr + C + Cr + N * Cr) * 4),
    )(pooled.reshape(N, C), w1.T, b1.reshape(1, Cr), w2.T, b2.reshape(1, C))

    # ---- pass 3: stream x and apply the channel gate -------------------------
    out = pl.pallas_call(
        _scale_kernel,
        out_shape=jax.ShapeDtypeStruct((N, C, HW), x.dtype),
        grid_spec=pltpu.PrefetchScalarGridSpec(
            num_scalar_prefetch=0,
            grid=(N, num_hw_tiles),
            in_specs=[
                pl.BlockSpec((1, C, thw), lambda n, t: (n, 0, t)),
                pl.BlockSpec((1, C, 1), lambda n, t: (n, 0, 0)),
            ],
            out_specs=pl.BlockSpec((1, C, thw), lambda n, t: (n, 0, t)),
        ),
        compiler_params=pltpu.CompilerParams(
            dimension_semantics=("parallel", "parallel"),
            vmem_limit_bytes=vmem_limit),
        cost_estimate=pl.CostEstimate(
            flops=N * C * HW,
            transcendentals=0,
            bytes_accessed=2 * N * C * HW * itemsize + N * C * 4),
    )(x, att.reshape(N, C, 1))

    return out.reshape(N, C, H, W)


def reference(x, w1, b1, w2, b2):
    pooled = jnp.mean(x, axis=(2, 3))                        # (N, C)
    h = jnp.maximum(pooled @ w1.T + b1, 0.0)                 # (N, Cr)
    att = jax.nn.sigmoid(h @ w2.T + b2)                      # (N, C)
    return x * att[:, :, None, None]


if __name__ == "__main__":
    N, C, H, W = 2, 4, 16, 16
    reduction_ratio = 1
    Cr = C // reduction_ratio

    key = jax.random.PRNGKey(0)
    kx, kw1, kb1, kw2, kb2 = jax.random.split(key, 5)

    x = jax.random.normal(kx, (N, C, H, W), dtype=jnp.float32)
    # Conv2d(channels, channels//r, 1) weight: (Cr, C, 1, 1) -> (Cr, C)
    w1 = jax.random.normal(kw1, (Cr, C), dtype=jnp.float32) * 0.1
    b1 = jax.random.normal(kb1, (Cr,), dtype=jnp.float32) * 0.1
    # Conv2d(channels//r, channels, 1) weight: (C, Cr, 1, 1) -> (C, Cr)
    w2 = jax.random.normal(kw2, (C, Cr), dtype=jnp.float32) * 0.1
    b2 = jax.random.normal(kb2, (C,), dtype=jnp.float32) * 0.1

    out = jax.block_until_ready(channel_attention(x, w1, b1, w2, b2))

    ref = reference(x, w1, b1, w2, b2)
    assert out.shape == ref.shape
    assert jnp.allclose(out, ref, atol=1e-5, rtol=1e-5), (
        f"max abs diff {jnp.max(jnp.abs(out - ref))}")

    print("KERNEL_OK")
</pallas_src>

<mosaic_0001>
module attributes {stable_mosaic.version = 11 : i64} {
  func.func @_pool_kernel(%arg0: i32, %arg1: i32, %arg2: memref<1x4x256xf32, #tpu.memory_space<vmem>>, %arg3: memref<1x4x1xf32, #tpu.memory_space<vmem>>) attributes {dimension_semantics = [#tpu.dimension_semantics<parallel>, #tpu.dimension_semantics<arbitrary>], iteration_bounds = array<i64: 2, 1>, scalar_prefetch = 0 : i64, scratch_operands = 0 : i64, tpu.core_type = #tpu.core_type<tc>, window_params = [{transform_indices = @transform_0, window_bounds = array<i64: 1, 4, 256>}, {transform_indices = @transform_1, window_bounds = array<i64: 1, 4, 1>}]} {
    %c0_i32 = arith.constant 0 : i32
    %0 = arith.cmpi eq, %arg1, %c0_i32 : i32
    %1 = arith.extui %0 : i1 to i32
    %c0_i32_0 = arith.constant 0 : i32
    %2 = arith.cmpi ne, %1, %c0_i32_0 : i32
    scf.if %2 {
      %cst_11 = arith.constant 0.000000e+00 : f32
      %12 = vector.broadcast %cst_11 : f32 to vector<1x4x1xf32>
      %c0_12 = arith.constant 0 : index
      %c0_13 = arith.constant 0 : index
      %c0_14 = arith.constant 0 : index
      %13 = vector.load %arg3[%c0_12, %c0_13, %c0_14] : memref<1x4x1xf32, #tpu.memory_space<vmem>>, vector<1x4x1xf32>
      tpu.vector_store %arg3[%c0_12, %c0_13, %c0_14], %12 {strides = array<i32>} : memref<1x4x1xf32, #tpu.memory_space<vmem>>, vector<1x4x1xf32>,
    } else {
    }
    %c0 = arith.constant 0 : index
    %c0_1 = arith.constant 0 : index
    %c0_2 = arith.constant 0 : index
    %3 = vector.load %arg3[%c0, %c0_1, %c0_2] : memref<1x4x1xf32, #tpu.memory_space<vmem>>, vector<1x4x1xf32>
    %c0_3 = arith.constant 0 : index
    %c0_4 = arith.constant 0 : index
    %c0_5 = arith.constant 0 : index
    %4 = vector.load %arg2[%c0_3, %c0_4, %c0_5] : memref<1x4x256xf32, #tpu.memory_space<vmem>>, vector<1x4x256xf32>
    %cst = arith.constant dense<0.000000e+00> : vector<1x4xf32>
    %5 = vector.multi_reduction <add>, %4, %cst [2] : vector<1x4x256xf32> to vector<1x4xf32>
    %6 = vector.shape_cast %5 : vector<1x4xf32> to vector<1x4x1xf32>
    %7 = arith.addf %3, %6 : vector<1x4x1xf32>
    %c0_6 = arith.constant 0 : index
    %c0_7 = arith.constant 0 : index
    %c0_8 = arith.constant 0 : index
    %8 = vector.load %arg3[%c0_6, %c0_7, %c0_8] : memref<1x4x1xf32, #tpu.memory_space<vmem>>, vector<1x4x1xf32>
    tpu.vector_store %arg3[%c0_6, %c0_7, %c0_8], %7 {strides = array<i32>} : memref<1x4x1xf32, #tpu.memory_space<vmem>>, vector<1x4x1xf32>,
    %c0_i32_9 = arith.constant 0 : i32
    %9 = arith.cmpi eq, %arg1, %c0_i32_9 : i32
    %10 = arith.extui %9 : i1 to i32
    %c0_i32_10 = arith.constant 0 : i32
    %11 = arith.cmpi ne, %10, %c0_i32_10 : i32
    scf.if %11 {
      %c0_11 = arith.constant 0 : index
      %c0_12 = arith.constant 0 : index
      %c0_13 = arith.constant 0 : index
      %12 = vector.load %arg3[%c0_11, %c0_12, %c0_13] : memref<1x4x1xf32, #tpu.memory_space<vmem>>, vector<1x4x1xf32>
      %cst_14 = arith.constant 3.906250e-03 : f32
      %13 = vector.broadcast %cst_14 : f32 to vector<1x4x1xf32>
      %14 = arith.mulf %12, %13 : vector<1x4x1xf32>
      %c0_15 = arith.constant 0 : index
      %c0_16 = arith.constant 0 : index
      %c0_17 = arith.constant 0 : index
      %15 = vector.load %arg3[%c0_15, %c0_16, %c0_17] : memref<1x4x1xf32, #tpu.memory_space<vmem>>, vector<1x4x1xf32>
      tpu.vector_store %arg3[%c0_15, %c0_16, %c0_17], %14 {strides = array<i32>} : memref<1x4x1xf32, #tpu.memory_space<vmem>>, vector<1x4x1xf32>,
    } else {
    }
    return
  }
  func.func @transform_0(%arg0: i32, %arg1: i32) -> (i32, i32, i32) {
    %c0_i32 = arith.constant 0 : i32
    %c0_i32_0 = arith.constant 0 : i32
    return %arg0, %c0_i32, %arg1 : i32, i32, i32
  }
  func.func @transform_1(%arg0: i32, %arg1: i32) -> (i32, i32, i32) {
    %c0_i32 = arith.constant 0 : i32
    %c0_i32_0 = arith.constant 0 : i32
    %c0_i32_1 = arith.constant 0 : i32
    return %arg0, %c0_i32, %c0_i32_0 : i32, i32, i32
  }
}

</mosaic_0001>

<llo_original>
// kernel: tpu_custom_call.1
$region0: #{tpu_custom_call.1}
  #allocation0 [shape = 'u32[]', space=smem, size = 0x4, offset = 0x4, fixed_abs, tag = 'smem constant byte address 0x4 - core index']
  #allocation1 [shape = 'u32[72,128]{1,0:T(1,128)}', space=vmem, size = 0x9000, scoped, tag = 'internal scratch']
  %s0 = inlined_call_operand.hbm [shape: f32[2,4,256], index: 0, kind: input, shape index: {}]
  %s1 = inlined_call_operand.vmem [shape: f32[2,4,1], index: 1, kind: output, shape index: {}]
  %s2 = sld [smem:[#allocation0]]
  $region49: #{tpu_custom_call.1} parent=0
    _
  %s4 = ssub.s32 1, %s2
  %s5 = scalar_select 0, %s4, %s2
  $region1: #{tpu_custom_call.1} parent=0
    #allocation2 [shape = 'u8[8192]{0}', space=vmem, size = 0x2000, scoped, tag = 'input window, operand 0']
    #allocation3 [shape = 's32[2]{0}', space=sflag, size = 0x8, scoped, tag = 'scoped memory for tpu_custom_call.1']
    %6 = vsyncpa [#allocation3], 0
    %s7 = scalar_lea.sflag [#allocation3], 1
    %8 = vsyncpa %s7, 0
    loop: start=0, step=1, limit=4
    $region2: #{tpu_custom_call.1} parent=1 // loop_pre_header
      _
    $region3: #{tpu_custom_call.1} parent=1 // loop_header
      %s10 = sphi 0, %s14
      %p11 = scmp.ge.s32.totalorder %s10, 4
      %s17 = sphi 0, %s29
      %s18 = sphi 0, %s25
      %s19 = sphi 0, %s17
      %s20 = sphi 0, %s18
      %s21 = sphi 0, %s19
      %s22 = sphi 0, %s20
      %s34 = sphi 0, %s36
      %s37 = sphi 0, %s34
      %s38 = sphi 0, %s37
      %s54 = sphi 0, %s38
      %s60 = sphi 0, %s62
      %s63 = sphi 0, %s60
      %s64 = sphi 0, %s63
      %s80 = sphi 0, %s64
    $region4: #{tpu_custom_call.1} parent=1 // loop_header_branch
      %13 = sbr.rel (%p11) target = $region8
    $region5: #{tpu_custom_call.1} parent=1 // loop_body
      %s15 = ssub.s32 %s10, 1
      %s16 = ssub.s32 %s10, 2
      %s23 = sadd.s32 1, %s18
      %p24 = scmp.ge.s32.totalorder %s23, 1
      %s25 = scalar_select %p24, 0, %s23
      %s26 = sadd.s32 1, %s17
      %s27 = scalar_select %p24, %s26, %s17
      %p28 = scmp.ge.s32.totalorder %s27, 2
      %s29 = scalar_select %p28, 0, %s27
      %s30 = ssub.s32 %s17, %s29
      %s31 = ssub.s32 %s18, %s25
      %s32 = sor.u32 %s30, %s31
      %p33 = scmp.eq.s32.totalorder %s32, 0
      %s35 = sadd.s32 %s34, 1
      %s36 = scalar_select %p33, %s34, %s35
      %p39 = pneg %p33
      %p40 = scmp.eq.s32.totalorder %s10, 1
      %p41 = por %p39, %p40
      %p42 = scmp.ne.s32.totalorder %s34, %s37
      %p43 = scmp.eq.s32.totalorder %s10, 0
      %p44 = por %p42, %p43
      %p45 = scmp.ne.s32.totalorder %s34, %s37
      %p46 = scmp.eq.s32.totalorder %s15, 1
      %p47 = por %p45, %p46
      %p48 = scmp.ne.s32.totalorder %s37, %s38
      %p49 = scmp.eq.s32.totalorder %s15, 0
      %p50 = por %p48, %p49
      %p51 = scmp.ne.s32.totalorder %s37, %s38
      %p52 = scmp.eq.s32.totalorder %s16, 1
      %p53 = por %p51, %p52
      %p55 = scmp.ne.s32.totalorder %s38, %s54
      %p56 = scmp.eq.s32.totalorder %s16, 0
      %p57 = por %p55, %p56
      %s58 = ssub.s32 %s17, %s29
      %p59 = scmp.eq.s32.totalorder %s58, 0
      %s61 = sadd.s32 %s60, 1
      %s62 = scalar_select %p59, %s60, %s61
      %p65 = pneg %p59
      %p66 = scmp.eq.s32.totalorder %s10, 1
      %p67 = por %p65, %p66
      %p68 = scmp.ne.s32.totalorder %s60, %s63
      %p69 = scmp.eq.s32.totalorder %s10, 0
      %p70 = por %p68, %p69
      %p71 = scmp.ne.s32.totalorder %s60, %s63
      %p72 = scmp.eq.s32.totalorder %s15, 1
      %p73 = por %p71, %p72
      %p74 = scmp.ne.s32.totalorder %s63, %s64
      %p75 = scmp.eq.s32.totalorder %s15, 0
      %p76 = por %p74, %p75
      %p77 = scmp.ne.s32.totalorder %s63, %s64
      %p78 = scmp.eq.s32.totalorder %s16, 1
      %p79 = por %p77, %p78
      %p81 = scmp.ne.s32.totalorder %s64, %s80
      %p82 = scmp.eq.s32.totalorder %s16, 0
      %p83 = por %p81, %p82
      %p84 = scmp.le.s32.totalorder 1, %s10
      %p85 = scmp.lt.s32.totalorder %s10, 3
      %p86 = pnand %p84, %p85
      %p87 = pneg %p86
      // Predicated region
      $region9: #{tpu_custom_call.1} parent=5 // pred_check
        _
      $region10: #{tpu_custom_call.1} parent=5 // pred_check_branch
        %89 = sbr.rel (%p86) target = $region12
      $region11: #{tpu_custom_call.1} parent=5 // pred_region
        %s90 = ssub.s32 %s10, 1
      $region12: #{tpu_custom_call.1} parent=5 // pred_fallthru
        _
      %p91 = scmp.lt.s32.totalorder %s10, 2
      // Predicated region
      $region13: #{tpu_custom_call.1} parent=5 // pred_check
        %p92 = pneg %p91
      $region14: #{tpu_custom_call.1} parent=5 // pred_check_branch
        %94 = sbr.rel (%p92) target = $region16
      $region15: #{tpu_custom_call.1} parent=5 // pred_region
        // Predicated region
        $region17: #{tpu_custom_call.1} parent=15 // pred_check
          %p95 = pneg %p44
        $region18: #{tpu_custom_call.1} parent=15 // pred_check_branch
          %97 = sbr.rel (%p95) target = $region20
        $region19: #{tpu_custom_call.1} parent=15 // pred_region
          %s98 = sand.u32 %s34, 1
          %s99 = scalar_lea.sflag [#allocation3], %s98
          %s100 = sand.u32 %s34, 1
          %s101 = smul.addr %s100, 8
          %s102 = scalar_lea.vmem [#allocation2], %s101
          %s103 = smul.u32 2, %s18
          %105 = vsyncadd %s99, 0
          %s106 = smul.addr %s17, 2
          %s107 = sadd.s32 %s103, %s106
          %s108 = smul.addr %s107, 4
          %s109 = scalar_lea.hbm %s0, %s108
          %s111 = sshll.u32 %s109, 4
          %s112 = int_to_ptr.hbm [resolvable:$true] %s111
          %s113 = sshll.u32 %s102, 4
          %s114 = int_to_ptr.vmem [resolvable:$true] %s113
          %116 = dma.hbm_to_vmem [thread:$0]  %s112, 128, %s114, %s99
        $region20: #{tpu_custom_call.1} parent=15 // pred_fallthru
          _
      $region16: #{tpu_custom_call.1} parent=5 // pred_fallthru
        _
      %p117 = scmp.le.s32.totalorder 1, %s10
      %p118 = scmp.lt.s32.totalorder %s10, 3
      %p119 = pnand %p117, %p118
      %p120 = pneg %p119
      // Predicated region
      $region21: #{tpu_custom_call.1} parent=5 // pred_check
        _
      $region22: #{tpu_custom_call.1} parent=5 // pred_check_branch
        %122 = sbr.rel (%p119) target = $region24
      $region23: #{tpu_custom_call.1} parent=5 // pred_region
        %s123 = ssub.s32 %s10, 1
        %s124 = sand.u32 %s37, 1
        %s125 = scalar_lea.sflag [#allocation3], %s124
        %s126 = sand.u32 %s37, 1
        %s127 = smul.addr %s126, 8
        %s128 = scalar_lea.vmem [#allocation2], %s127
        // Predicated region
        $region25: #{tpu_custom_call.1} parent=23 // pred_check
          %p129 = pneg %p50
        $region26: #{tpu_custom_call.1} parent=23 // pred_check_branch
          %131 = sbr.rel (%p129) target = $region28
        $region27: #{tpu_custom_call.1} parent=23 // pred_region
          %133 = dma.done %s125, 128
        $region28: #{tpu_custom_call.1} parent=23 // pred_fallthru
          _
        %s134 = sand.u32 %s37, 1
        %s135 = scalar_lea.sflag [#allocation3], %s134
        %s136 = sand.u32 %s37, 1
        %s137 = smul.addr %s136, 8
        %s138 = scalar_lea.vmem [#allocation2], %s137
        %p139 = pneg %p50
        %p140 = pneg %p47
        %p141 = pneg %p76
        %p142 = pneg %p73
        %p143 = scmp.lt.s32.totalorder %s19, 1
        %s144 = scalar_select %p143, %s19, 1
        %s145 = smul.addr %s144, 4
        %s146 = scalar_lea.vmem %s1, %s145
        %s147 = smul.u32 2, %s20
        %p148 = scmp.lt.s32.totalorder %s19, 1
        %s149 = scalar_select %p148, %s19, 1
        %s150 = smul.addr %s149, 4
        %s151 = scalar_lea.vmem %s1, %s150
        %p152 = scmp.eq.s32.totalorder %s20, 0
        // Predicated region
        $region29: #{tpu_custom_call.1} parent=23 // pred_check
          %p153 = pneg %p152
        $region30: #{tpu_custom_call.1} parent=23 // pred_check_branch
          %155 = sbr.rel (%p153) target = $region32
        $region31: #{tpu_custom_call.1} parent=23 // pred_region
          %vm156 = vcmask 3072
          %157 = vst.msk [vmem:[%s151] sm:$0xf] %vm156, 0.0
        $region32: #{tpu_custom_call.1} parent=23 // pred_fallthru
          _
        %v158 = vld [vmem:[%s151] sm:$0xf]
        %v159 = vld [vmem:[%s128] sm:$0xff]
        %161 = vst [vmem:[#allocation1] ss:$2 sm:$0xff] %v159
        %v162 = vld.sshfl [vmem:[#allocation1] sm:$0xff pattern:$0x75316420]
        %v163 = vld.sshfl [vmem:[#allocation1 + $0x8] sm:$0xff pattern:$0x75316420]
        %vm166 = vcmask 1043456
        %v167 = vsel %vm166, %v162, 0.0
        %v168 = vsel %vm166, %v163, 0.0
        %v169 = vadd.f32 %v167, %v168
        %170 = vadd.xlane.f32.xlu0 %v169
        %v171 = vpop.xlane.xlu0 %170
        %v172 = vadd.f32 %v158, %v171
        %vm173 = vcmask 3072
        %174 = vst.msk [vmem:[%s151] sm:$0xf] %vm173, %v172
        // Predicated region
        $region33: #{tpu_custom_call.1} parent=23 // pred_check
          %p175 = pneg %p152
        $region34: #{tpu_custom_call.1} parent=23 // pred_check_branch
          %177 = sbr.rel (%p175) target = $region36
        $region35: #{tpu_custom_call.1} parent=23 // pred_region
          %v178 = vld [vmem:[%s151] sm:$0xf]
          %v179 = vmul.f32 %v178, 0.00390625
          %180 = vst.msk [vmem:[%s151] sm:$0xf] %vm173, %v179
        $region36: #{tpu_custom_call.1} parent=23 // pred_fallthru
          _
        %p181 = scmp.lt.s32.totalorder %s19, 1
        %s182 = scalar_select %p181, %s19, 1
        %s183 = smul.addr %s182, 4
        %s184 = scalar_lea.vmem %s1, %s183
        // Predicated region
        $region37: #{tpu_custom_call.1} parent=23 // pred_check
          %p185 = pneg %p73
        $region38: #{tpu_custom_call.1} parent=23 // pred_check_branch
          %187 = sbr.rel (%p185) target = $region40
        $region39: #{tpu_custom_call.1} parent=23 // pred_region
          _
        $region40: #{tpu_custom_call.1} parent=23 // pred_fallthru
          _
      $region24: #{tpu_custom_call.1} parent=5 // pred_fallthru
        _
      %p188 = scmp.le.s32.totalorder 2, %s10
      // Predicated region
      $region41: #{tpu_custom_call.1} parent=5 // pred_check
        %p189 = pneg %p188
      $region42: #{tpu_custom_call.1} parent=5 // pred_check_branch
        %191 = sbr.rel (%p189) target = $region44
      $region43: #{tpu_custom_call.1} parent=5 // pred_region
        %s192 = ssub.s32 %s10, 2
        // Predicated region
        $region45: #{tpu_custom_call.1} parent=43 // pred_check
          %p193 = pneg %p79
        $region46: #{tpu_custom_call.1} parent=43 // pred_check_branch
          %195 = sbr.rel (%p193) target = $region48
        $region47: #{tpu_custom_call.1} parent=43 // pred_region
          %p196 = scmp.lt.s32.totalorder %s21, 1
          %s197 = scalar_select %p196, %s21, 1
          %s198 = smul.addr %s197, 4
          %s199 = scalar_lea.vmem %s1, %s198
        $region48: #{tpu_custom_call.1} parent=43 // pred_fallthru
          _
      $region44: #{tpu_custom_call.1} parent=5 // pred_fallthru
        _
    $region6: #{tpu_custom_call.1} parent=1 // loop_footer
      %s14 = sadd.s32 1, %s10
    $region7: #{tpu_custom_call.1} parent=1 // loop_footer_branch
      %9 = sbr.rel target = $region3
    $region8: #{tpu_custom_call.1} parent=1 // loop_exit
      _
    %200 = vsyncpa [#allocation3], 1
    %s201 = scalar_lea.sflag [#allocation3], 1
    %202 = vsyncpa %s201, 1

</llo_original>
